<compile_context>
chip_gen: v7x
topology: tpu7x:2x2x1
jax: 0.10.0
libtpu: 0.0.40
codegen_flags: <defaults>
</compile_context>

<pallas_src>
import functools
import math

import jax
import jax.numpy as jnp
from jax.experimental import pallas as pl
from jax.experimental.pallas import tpu as pltpu


# ---------------------------------------------------------------------------
# Kernels
# ---------------------------------------------------------------------------
def _context_kernel(ctx_ref, pe_ref, out_ref, *, batch):
    """out[i, b*F + f] = ctx[i, b*F + f] + pe[i, f].

    pe is widened once per tile (lane-concatenated `batch` copies), so the add
    and the store are a single full-slab operation per tile: no per-batch
    column slices, no masked partial stores.
    """
    pe_tile = pe_ref[...]                                      # (tile_n, F)
    if batch == 1:
        pe_wide = pe_tile
    else:
        pe_wide = jnp.concatenate([pe_tile] * batch, axis=1)   # (tile_n, B*F)
    out_ref[...] = ctx_ref[...].astype(out_ref.dtype) + pe_wide


def _target_kernel(tok_ref, tgt_ref, pe_ref, out_ref):
    """out[b, t, f] = tgt[b, t, f] + pe[tok_ids[b], 0, f].

    The needed pe row was already DMA'd by the BlockSpec index_map using the
    scalar-prefetched token ids, so the body is one broadcast add with a
    single whole-block store.
    """
    del tok_ref                                                # used by index_maps only
    out_ref[...] = tgt_ref[...].astype(out_ref.dtype) + pe_ref[...]


# ---------------------------------------------------------------------------
# Sizing helpers
# ---------------------------------------------------------------------------
def _vmem_capacity_bytes():
    """Physical VMEM per TensorCore; conservative fallback if the query fails."""
    try:
        cap = int(getattr(pltpu.get_tpu_info(), "vmem_capacity_bytes", 0))
        if cap > 0:
            return cap
    except Exception:
        pass
    return 64 << 20        # v7x is the smallest (64 MiB); v5e/v6e have 128 MiB


def _sublane_step(dtype):
    """Row-tile granularity: 8 for 4-byte, 16 for 2-byte, 32 for 1-byte dtypes."""
    return max(8, 32 // max(1, jnp.dtype(dtype).itemsize))


def _pick_row_tile(n_rows, bytes_per_row, *, step, vmem_budget, max_rows=2048):
    """Largest row tile that divides n_rows, is a multiple of `step`, keeps the
    double-buffered working set under `vmem_budget`, and (when possible) leaves
    >= 2 grid steps so v7x can shard the stream across both TensorCores."""
    if n_rows <= step or n_rows % step != 0:
        return n_rows
    cap = min(max_rows, n_rows,
              max(step, vmem_budget // (2 * max(bytes_per_row, 1))))
    best, best_multi = step, None
    t = step
    while t <= cap:
        if n_rows % t == 0:
            best = t
            if n_rows // t >= 2:
                best_multi = t
        t += step
    return best_multi if best_multi is not None else best


# ---------------------------------------------------------------------------
# Forward wrapper
# ---------------------------------------------------------------------------
def positional_encoding_forward(positional_encoding, context_tokens, target_tokens,
                                target_bbox, *, ctx_row_tile=None,
                                donate_context=False):
    """pe: (N,1,F); context_tokens: (N,B,F); target_tokens: (T,B,F); bbox: (B,4)."""
    n_ctx, one, feat = positional_encoding.shape
    assert one == 1
    n_ctx2, batch, feat2 = context_tokens.shape
    n_tgt, batch2, feat3 = target_tokens.shape
    assert (n_ctx2, feat2) == (n_ctx, feat)
    assert (batch2, feat3) == (batch, feat)
    assert target_bbox.shape == (batch, 4)

    tokens_per_dim = int(round(math.sqrt(n_ctx)))
    assert tokens_per_dim * tokens_per_dim == n_ctx, (
        "num_context_tokens must be a perfect square")

    in_dtype = context_tokens.dtype
    # Mirror torch type promotion (e.g. bf16 activations + f32 param -> f32 out).
    out_dtype = jnp.result_type(in_dtype, positional_encoding.dtype)
    pe3d = positional_encoding.astype(out_dtype)               # (N, 1, F)
    pe2d = pe3d.reshape(n_ctx, feat)                           # (N, F)
    ctx_flat = context_tokens.reshape(n_ctx, batch * feat)     # (N, B*F), dense view

    # ---- bbox -> token ids (tiny B-length op in the wrapper, prefetched) ----
    bbox = target_bbox.astype(jnp.float32)
    col = jnp.ceil((bbox[:, 0] + bbox[:, 2] * 0.5) * tokens_per_dim) - 1.0
    row = jnp.ceil((bbox[:, 1] + bbox[:, 3] * 0.5) * tokens_per_dim) - 1.0
    tok_ids = (col + row * tokens_per_dim).astype(jnp.int32)
    # TODO(synk): PyTorch index_select would raise on out-of-range ids; we clamp
    # so degenerate boxes stay in-bounds (Pallas has no runtime bounds check).
    tok_ids = jnp.clip(tok_ids, 0, n_ctx - 1)

    itemsize = max(jnp.dtype(in_dtype).itemsize, jnp.dtype(out_dtype).itemsize)
    vmem_ceiling = min(48 << 20, (_vmem_capacity_bytes() * 3) // 4)

    # ---- context: streaming broadcast-add, gridded + double-buffered over N ----
    bytes_per_row = (2 * batch * feat + feat) * itemsize       # ctx-in + out + pe / row
    if ctx_row_tile is not None:
        tile_n = ctx_row_tile
    else:
        tile_n = _pick_row_tile(
            n_ctx, bytes_per_row,
            step=_sublane_step(in_dtype),
            vmem_budget=min(32 << 20, vmem_ceiling // 2))
    assert n_ctx % tile_n == 0
    ctx_vmem_limit = int(min(vmem_ceiling,
                             max(8 << 20, 2 * tile_n * bytes_per_row + (4 << 20))))

    bf = batch * feat
    alias = {0: 0} if (donate_context and out_dtype == in_dtype) else {}
    ctx_out_flat = pl.pallas_call(
        functools.partial(_context_kernel, batch=batch),
        out_shape=jax.ShapeDtypeStruct((n_ctx, bf), out_dtype),
        grid=(n_ctx // tile_n,),
        in_specs=[
            pl.BlockSpec((tile_n, bf), lambda i: (i, 0)),
            pl.BlockSpec((tile_n, feat), lambda i: (i, 0)),
        ],
        out_specs=pl.BlockSpec((tile_n, bf), lambda i: (i, 0)),
        input_output_aliases=alias,
        compiler_params=pltpu.CompilerParams(
            # TODO(synk): evaluate pltpu.CORE_PARALLEL here on v7x once profiled.
            dimension_semantics=("parallel",),
            vmem_limit_bytes=ctx_vmem_limit,
        ),
    )(ctx_flat, pe2d)

    # ---- target: per-batch pe row gathered by the index_map (scalar prefetch) ----
    # (B, T, F) layout so every block keeps the full (T, F) trailing dims and the
    # add is a single whole-block store; only B pe rows are ever DMA'd.
    tgt_btf = jnp.transpose(target_tokens, (1, 0, 2))          # (B, T, F), tiny
    tgt_out_btf = pl.pallas_call(
        _target_kernel,
        out_shape=jax.ShapeDtypeStruct((batch, n_tgt, feat), out_dtype),
        grid_spec=pltpu.PrefetchScalarGridSpec(
            num_scalar_prefetch=1,
            grid=(batch,),
            in_specs=[
                pl.BlockSpec((1, n_tgt, feat), lambda b, tok: (b, 0, 0)),
                pl.BlockSpec((1, 1, feat), lambda b, tok: (tok[b], 0, 0)),
            ],
            out_specs=pl.BlockSpec((1, n_tgt, feat), lambda b, tok: (b, 0, 0)),
        ),
        compiler_params=pltpu.CompilerParams(
            dimension_semantics=("parallel",),
        ),
    )(tok_ids, tgt_btf, pe3d)

    return (ctx_out_flat.reshape(n_ctx, batch, feat),
            jnp.transpose(tgt_out_btf, (1, 0, 2)))


# ---------------------------------------------------------------------------
# Self-test
# ---------------------------------------------------------------------------
def _reference(pe, ctx, tgt, bbox):
    """Pure-JAX mirror of the PyTorch forward."""
    n_ctx = pe.shape[0]
    tpd = int(round(math.sqrt(n_ctx)))
    tok = (jnp.ceil((bbox[:, 0] + bbox[:, 2] / 2) * tpd) - 1
           + (jnp.ceil((bbox[:, 1] + bbox[:, 3] / 2) * tpd) - 1) * tpd
           ).astype(jnp.int32)
    return ctx + pe, tgt + jnp.transpose(pe[tok], (1, 0, 2))


if __name__ == "__main__":
    root = jax.random.PRNGKey(0)

    cases = [
        # (num_context_tokens, num_token_features, batch, num_target_tokens)
        (16, 32, 2, 4),     # tiny, lane-misaligned F (exercises the wide-add path)
        (64, 128, 8, 8),    # 128-aligned F, multi-tile context grid
    ]
    for idx, (n_ctx, feat, batch, n_tgt) in enumerate(cases):
        k_pe, k_ctx, k_tgt, k_box = jax.random.split(jax.random.fold_in(root, idx), 4)

        # Deterministic xavier_uniform_-style init for the (N, 1, F) parameter.
        bound = math.sqrt(6.0 / (feat + n_ctx * feat))
        pe = jax.random.uniform(k_pe, (n_ctx, 1, feat), minval=-bound,
                                maxval=bound, dtype=jnp.float32)
        ctx = jax.random.normal(k_ctx, (n_ctx, batch, feat), dtype=jnp.float32)
        tgt = jax.random.normal(k_tgt, (n_tgt, batch, feat), dtype=jnp.float32)
        # Relative [xmin, ymin, w, h] boxes whose centers land strictly inside (0, 1).
        xy = jax.random.uniform(k_box, (batch, 2), minval=0.05, maxval=0.55)
        wh = jax.random.uniform(jax.random.fold_in(k_box, 1), (batch, 2),
                                minval=0.10, maxval=0.30)
        bbox = jnp.concatenate([xy, wh], axis=1)

        ctx_out, tgt_out = positional_encoding_forward(pe, ctx, tgt, bbox)
        jax.block_until_ready((ctx_out, tgt_out))

        ctx_exp, tgt_exp = _reference(pe, ctx, tgt, bbox)
        assert ctx_out.shape == ctx_exp.shape and tgt_out.shape == tgt_exp.shape
        assert jnp.allclose(ctx_out, ctx_exp, atol=1e-5), f"context mismatch (case {idx})"
        assert jnp.allclose(tgt_out, tgt_exp, atol=1e-5), f"target mismatch (case {idx})"

    print("KERNEL_OK")
</pallas_src>

<mosaic_0001>
module attributes {stable_mosaic.version = 11 : i64} {
  func.func @_context_kernel(%arg0: i32, %arg1: memref<8x64xf32, #tpu.memory_space<vmem>>, %arg2: memref<8x32xf32, #tpu.memory_space<vmem>>, %arg3: memref<8x64xf32, #tpu.memory_space<vmem>>) attributes {dimension_semantics = [#tpu.dimension_semantics<parallel>], iteration_bounds = array<i64: 2>, scalar_prefetch = 0 : i64, scratch_operands = 0 : i64, tpu.core_type = #tpu.core_type<tc>, window_params = [{transform_indices = @transform_0, window_bounds = array<i64: 8, 64>}, {transform_indices = @transform_1, window_bounds = array<i64: 8, 32>}, {transform_indices = @transform_2, window_bounds = array<i64: 8, 64>}]} {
    %c0 = arith.constant 0 : index
    %c0_0 = arith.constant 0 : index
    %0 = vector.load %arg2[%c0, %c0_0] : memref<8x32xf32, #tpu.memory_space<vmem>>, vector<8x32xf32>
    %1 = tpu.concatenate %0, %0 in 1 : vector<8x32xf32>, vector<8x32xf32> -> vector<8x64xf32>
    %c0_1 = arith.constant 0 : index
    %c0_2 = arith.constant 0 : index
    %2 = vector.load %arg1[%c0_1, %c0_2] : memref<8x64xf32, #tpu.memory_space<vmem>>, vector<8x64xf32>
    %3 = arith.addf %2, %1 : vector<8x64xf32>
    %c0_3 = arith.constant 0 : index
    %c0_4 = arith.constant 0 : index
    %4 = vector.load %arg3[%c0_3, %c0_4] : memref<8x64xf32, #tpu.memory_space<vmem>>, vector<8x64xf32>
    tpu.vector_store %arg3[%c0_3, %c0_4], %3 {strides = array<i32>} : memref<8x64xf32, #tpu.memory_space<vmem>>, vector<8x64xf32>,
    return
  }
  func.func @transform_0(%arg0: i32) -> (i32, i32) {
    %c0_i32 = arith.constant 0 : i32
    %c0_i32_0 = arith.constant 0 : i32
    return %arg0, %c0_i32 : i32, i32
  }
  func.func @transform_1(%arg0: i32) -> (i32, i32) {
    %c0_i32 = arith.constant 0 : i32
    %c0_i32_0 = arith.constant 0 : i32
    return %arg0, %c0_i32 : i32, i32
  }
  func.func @transform_2(%arg0: i32) -> (i32, i32) {
    %c0_i32 = arith.constant 0 : i32
    %c0_i32_0 = arith.constant 0 : i32
    return %arg0, %c0_i32 : i32, i32
  }
}

</mosaic_0001>

<llo_original>
// kernel: tpu_custom_call.1
$region0: #{tpu_custom_call.1}
  #allocation0 [shape = 'u32[]', space=smem, size = 0x4, offset = 0x4, fixed_abs, tag = 'smem constant byte address 0x4 - core index']
  #allocation1 [shape = 'u32[144,128]{1,0:T(1,128)}', space=vmem, size = 0x12000, scoped, tag = 'internal scratch']
  %s0 = inlined_call_operand.hbm [shape: f32[16,64], index: 0, kind: input, shape index: {}]
  %s1 = inlined_call_operand.hbm [shape: f32[16,32], index: 1, kind: input, shape index: {}]
  %s2 = inlined_call_operand.hbm [shape: f32[16,64], index: 2, kind: output, shape index: {}]
  %s3 = sld [smem:[#allocation0]]
  $region49: #{tpu_custom_call.1} parent=0
    _
  %s5 = ssub.s32 1, %s3
  %s6 = scalar_select 0, %s5, %s3
  $region1: #{tpu_custom_call.1} parent=0
    #allocation2 [shape = 'u8[8192]{0}', space=vmem, size = 0x2000, scoped, tag = 'input window, operand 0']
    #allocation3 [shape = 's32[2]{0}', space=sflag, size = 0x8, scoped, tag = 'scoped memory for tpu_custom_call.1']
    #allocation4 [shape = 's32[2]{0}', space=sflag, size = 0x8, scoped, tag = 'scoped memory for tpu_custom_call.1']
    #allocation5 [shape = 'u8[8192]{0}', space=vmem, size = 0x2000, scoped, tag = 'input window, operand 1']
    #allocation6 [shape = 's32[2]{0}', space=sflag, size = 0x8, scoped, tag = 'scoped memory for tpu_custom_call.1']
    #allocation7 [shape = 'u8[8192]{0}', space=vmem, size = 0x2000, scoped, tag = 'output window, operand 0']
    %7 = vsyncpa [#allocation3], 0
    %s8 = scalar_lea.sflag [#allocation3], 1
    %9 = vsyncpa %s8, 0
    %10 = vsyncpa [#allocation6], 0
    %s11 = scalar_lea.sflag [#allocation6], 1
    %12 = vsyncpa %s11, 0
    %13 = vsyncpa [#allocation4], 0
    %s14 = scalar_lea.sflag [#allocation4], 1
    %15 = vsyncpa %s14, 0
    loop: start=0, step=1, limit=4
    $region2: #{tpu_custom_call.1} parent=1 // loop_pre_header
      _
    $region3: #{tpu_custom_call.1} parent=1 // loop_header
      %s17 = sphi 0, %s21
      %p18 = scmp.ge.s32.totalorder %s17, 4
      %s27 = sphi 0, %s29
      %s30 = sphi 0, %s27
      %s31 = sphi 0, %s30
      %s47 = sphi 0, %s31
      %s53 = sphi 0, %s55
      %s56 = sphi 0, %s53
      %s57 = sphi 0, %s56
      %s73 = sphi 0, %s57
      %s79 = sphi 0, %s81
      %s82 = sphi 0, %s79
      %s83 = sphi 0, %s82
      %s99 = sphi 0, %s83
    $region4: #{tpu_custom_call.1} parent=1 // loop_header_branch
      %20 = sbr.rel (%p18) target = $region8
    $region5: #{tpu_custom_call.1} parent=1 // loop_body
      %s22 = ssub.s32 %s17, 1
      %s23 = ssub.s32 %s17, 2
      %s24 = sadd.s32 %s17, 1
      %s25 = ssub.s32 %s17, %s24
      %p26 = scmp.eq.s32.totalorder %s25, 0
      %s28 = sadd.s32 %s27, 1
      %s29 = scalar_select %p26, %s27, %s28
      %p32 = pneg %p26
      %p33 = scmp.eq.s32.totalorder %s17, 1
      %p34 = por %p32, %p33
      %p35 = scmp.ne.s32.totalorder %s27, %s30
      %p36 = scmp.eq.s32.totalorder %s17, 0
      %p37 = por %p35, %p36
      %p38 = scmp.ne.s32.totalorder %s27, %s30
      %p39 = scmp.eq.s32.totalorder %s22, 1
      %p40 = por %p38, %p39
      %p41 = scmp.ne.s32.totalorder %s30, %s31
      %p42 = scmp.eq.s32.totalorder %s22, 0
      %p43 = por %p41, %p42
      %p44 = scmp.ne.s32.totalorder %s30, %s31
      %p45 = scmp.eq.s32.totalorder %s23, 1
      %p46 = por %p44, %p45
      %p48 = scmp.ne.s32.totalorder %s31, %s47
      %p49 = scmp.eq.s32.totalorder %s23, 0
      %p50 = por %p48, %p49
      %s51 = ssub.s32 %s17, %s24
      %p52 = scmp.eq.s32.totalorder %s51, 0
      %s54 = sadd.s32 %s53, 1
      %s55 = scalar_select %p52, %s53, %s54
      %p58 = pneg %p52
      %p59 = scmp.eq.s32.totalorder %s17, 1
      %p60 = por %p58, %p59
      %p61 = scmp.ne.s32.totalorder %s53, %s56
      %p62 = scmp.eq.s32.totalorder %s17, 0
      %p63 = por %p61, %p62
      %p64 = scmp.ne.s32.totalorder %s53, %s56
      %p65 = scmp.eq.s32.totalorder %s22, 1
      %p66 = por %p64, %p65
      %p67 = scmp.ne.s32.totalorder %s56, %s57
      %p68 = scmp.eq.s32.totalorder %s22, 0
      %p69 = por %p67, %p68
      %p70 = scmp.ne.s32.totalorder %s56, %s57
      %p71 = scmp.eq.s32.totalorder %s23, 1
      %p72 = por %p70, %p71
      %p74 = scmp.ne.s32.totalorder %s57, %s73
      %p75 = scmp.eq.s32.totalorder %s23, 0
      %p76 = por %p74, %p75
      %s77 = ssub.s32 %s17, %s24
      %p78 = scmp.eq.s32.totalorder %s77, 0
      %s80 = sadd.s32 %s79, 1
      %s81 = scalar_select %p78, %s79, %s80
      %p84 = pneg %p78
      %p85 = scmp.eq.s32.totalorder %s17, 1
      %p86 = por %p84, %p85
      %p87 = scmp.ne.s32.totalorder %s79, %s82
      %p88 = scmp.eq.s32.totalorder %s17, 0
      %p89 = por %p87, %p88
      %p90 = scmp.ne.s32.totalorder %s79, %s82
      %p91 = scmp.eq.s32.totalorder %s22, 1
      %p92 = por %p90, %p91
      %p93 = scmp.ne.s32.totalorder %s82, %s83
      %p94 = scmp.eq.s32.totalorder %s22, 0
      %p95 = por %p93, %p94
      %p96 = scmp.ne.s32.totalorder %s82, %s83
      %p97 = scmp.eq.s32.totalorder %s23, 1
      %p98 = por %p96, %p97
      %p100 = scmp.ne.s32.totalorder %s83, %s99
      %p101 = scmp.eq.s32.totalorder %s23, 0
      %p102 = por %p100, %p101
      %p103 = scmp.le.s32.totalorder 1, %s17
      %p104 = scmp.lt.s32.totalorder %s17, 3
      %p105 = pnand %p103, %p104
      %p106 = pneg %p105
      // Predicated region
      $region9: #{tpu_custom_call.1} parent=5 // pred_check
        _
      $region10: #{tpu_custom_call.1} parent=5 // pred_check_branch
        %108 = sbr.rel (%p105) target = $region12
      $region11: #{tpu_custom_call.1} parent=5 // pred_region
        %s109 = ssub.s32 %s17, 1
      $region12: #{tpu_custom_call.1} parent=5 // pred_fallthru
        _
      %p110 = scmp.lt.s32.totalorder %s17, 2
      // Predicated region
      $region13: #{tpu_custom_call.1} parent=5 // pred_check
        %p111 = pneg %p110
      $region14: #{tpu_custom_call.1} parent=5 // pred_check_branch
        %113 = sbr.rel (%p111) target = $region16
      $region15: #{tpu_custom_call.1} parent=5 // pred_region
        // Predicated region
        $region17: #{tpu_custom_call.1} parent=15 // pred_check
          %p114 = pneg %p37
        $region18: #{tpu_custom_call.1} parent=15 // pred_check_branch
          %116 = sbr.rel (%p114) target = $region20
        $region19: #{tpu_custom_call.1} parent=15 // pred_region
          %s117 = sand.u32 %s27, 1
          %s118 = scalar_lea.sflag [#allocation3], %s117
          %s119 = sand.u32 %s27, 1
          %s120 = smul.addr %s119, 8
          %s121 = scalar_lea.vmem [#allocation2], %s120
          %s123 = ssub.s32 128, 128
          %124 = vsyncadd %s118, %s123
          %s125 = smul.addr %s17, 128
          %s126 = scalar_lea.hbm %s0, %s125
          %s128 = sshll.u32 %s121, 4
          %s129 = int_to_ptr.vmem [resolvable:$true] %s128
          %131 = dma.hbm_to_vmem [thread:$0]  %s126, 128, %s129, %s118
        $region20: #{tpu_custom_call.1} parent=15 // pred_fallthru
          _
        // Predicated region
        $region21: #{tpu_custom_call.1} parent=15 // pred_check
          %p132 = pneg %p63
        $region22: #{tpu_custom_call.1} parent=15 // pred_check_branch
          %134 = sbr.rel (%p132) target = $region24
        $region23: #{tpu_custom_call.1} parent=15 // pred_region
          %s135 = sand.u32 %s53, 1
          %s136 = scalar_lea.sflag [#allocation6], %s135
          %s137 = sand.u32 %s53, 1
          %s138 = smul.addr %s137, 8
          %s139 = scalar_lea.vmem [#allocation5], %s138
          %s141 = ssub.s32 128, 128
          %142 = vsyncadd %s136, %s141
          %s143 = smul.addr %s17, 128
          %s144 = scalar_lea.hbm %s1, %s143
          %s146 = sshll.u32 %s139, 4
          %s147 = int_to_ptr.vmem [resolvable:$true] %s146
          %149 = dma.hbm_to_vmem [thread:$0]  %s144, 128, %s147, %s136
        $region24: #{tpu_custom_call.1} parent=15 // pred_fallthru
          _
      $region16: #{tpu_custom_call.1} parent=5 // pred_fallthru
        _
      %p150 = scmp.le.s32.totalorder 1, %s17
      %p151 = scmp.lt.s32.totalorder %s17, 3
      %p152 = pnand %p150, %p151
      %p153 = pneg %p152
      // Predicated region
      $region25: #{tpu_custom_call.1} parent=5 // pred_check
        _
      $region26: #{tpu_custom_call.1} parent=5 // pred_check_branch
        %155 = sbr.rel (%p152) target = $region28
      $region27: #{tpu_custom_call.1} parent=5 // pred_region
        %s156 = ssub.s32 %s17, 1
        %s157 = sand.u32 %s30, 1
        %s158 = scalar_lea.sflag [#allocation3], %s157
        %s159 = sand.u32 %s30, 1
        %s160 = smul.addr %s159, 8
        %s161 = scalar_lea.vmem [#allocation2], %s160
        // Predicated region
        $region29: #{tpu_custom_call.1} parent=27 // pred_check
          %p162 = pneg %p43
        $region30: #{tpu_custom_call.1} parent=27 // pred_check_branch
          %164 = sbr.rel (%p162) target = $region32
        $region31: #{tpu_custom_call.1} parent=27 // pred_region
          %165 = dma.done %s158, 128
        $region32: #{tpu_custom_call.1} parent=27 // pred_fallthru
          _
        %s166 = sand.u32 %s56, 1
        %s167 = scalar_lea.sflag [#allocation6], %s166
        %s168 = sand.u32 %s56, 1
        %s169 = smul.addr %s168, 8
        %s170 = scalar_lea.vmem [#allocation5], %s169
        // Predicated region
        $region33: #{tpu_custom_call.1} parent=27 // pred_check
          %p171 = pneg %p69
        $region34: #{tpu_custom_call.1} parent=27 // pred_check_branch
          %173 = sbr.rel (%p171) target = $region36
        $region35: #{tpu_custom_call.1} parent=27 // pred_region
          %174 = dma.done %s167, 128
        $region36: #{tpu_custom_call.1} parent=27 // pred_fallthru
          _
        %s175 = sand.u32 %s30, 1
        %s176 = scalar_lea.sflag [#allocation3], %s175
        %s177 = sand.u32 %s30, 1
        %s178 = smul.addr %s177, 8
        %s179 = scalar_lea.vmem [#allocation2], %s178
        %p180 = pneg %p43
        %p181 = pneg %p40
        %s182 = sand.u32 %s56, 1
        %s183 = scalar_lea.sflag [#allocation6], %s182
        %s184 = sand.u32 %s56, 1
        %s185 = smul.addr %s184, 8
        %s186 = scalar_lea.vmem [#allocation5], %s185
        %p187 = pneg %p69
        %p188 = pneg %p66
        %p189 = pneg %p95
        %p190 = pneg %p92
        %s191 = sand.u32 %s82, 1
        %s192 = scalar_lea.sflag [#allocation4], %s191
        %s193 = sand.u32 %s82, 1
        %s194 = smul.addr %s193, 8
        %s195 = scalar_lea.vmem [#allocation7], %s194
        %v196 = vld [vmem:[%s170] sm:$0xff]
        %198 = vrot.lane.b32.xlu0 %v196, 32
        %v199 = vpop.permute.xlu0 %198
        %vm201 = vcmask 261120
        %v202 = vsel %vm201, %v196, %v199
        %v203 = vld [vmem:[%s161] sm:$0xff]
        %v204 = vadd.f32 %v203, %v202
        %vm205 = vcmask 523264
        %206 = vst.msk [vmem:[%s195] sm:$0xff] %vm205, %v204
        %s207 = sand.u32 %s82, 1
        %s208 = scalar_lea.sflag [#allocation4], %s207
        %s209 = sand.u32 %s82, 1
        %s210 = smul.addr %s209, 8
        %s211 = scalar_lea.vmem [#allocation7], %s210
        // Predicated region
        $region37: #{tpu_custom_call.1} parent=27 // pred_check
          %p212 = pneg %p92
        $region38: #{tpu_custom_call.1} parent=27 // pred_check_branch
          %214 = sbr.rel (%p212) target = $region40
        $region39: #{tpu_custom_call.1} parent=27 // pred_region
          %s216 = ssub.s32 128, 128
          %217 = vsyncadd %s208, %s216
          %s218 = smul.addr %s22, 128
          %s219 = scalar_lea.hbm %s2, %s218
          %s221 = sshll.u32 %s211, 4
          %s222 = int_to_ptr.vmem [resolvable:$true] %s221
          %224 = dma.vmem_to_hbm [thread:$0]  %s222, 128, %s219, %s208
        $region40: #{tpu_custom_call.1} parent=27 // pred_fallthru
          _
      $region28: #{tpu_custom_call.1} parent=5 // pred_fallthru
        _
      %p225 = scmp.le.s32.totalorder 2, %s17
      // Predicated region
      $region41: #{tpu_custom_call.1} parent=5 // pred_check
        %p226 = pneg %p225
      $region42: #{tpu_custom_call.1} parent=5 // pred_check_branch
        %228 = sbr.rel (%p226) target = $region44
      $region43: #{tpu_custom_call.1} parent=5 // pred_region
        %s229 = ssub.s32 %s17, 2
        // Predicated region
        $region45: #{tpu_custom_call.1} parent=43 // pred_check
          %p230 = pneg %p98
        $region46: #{tpu_custom_call.1} parent=43 // pred_check_branch
          %232 = sbr.rel (%p230) target = $region48
        $region47: #{tpu_custom_call.1} parent=43 // pred_region
          %s233 = sand.u32 %s83, 1
          %s234 = scalar_lea.sflag [#allocation4], %s233
          %s235 = sand.u32 %s83, 1
          %s236 = smul.addr %s235, 8
          %s237 = scalar_lea.vmem [#allocation7], %s236
          %238 = dma.done %s234, 128
        $region48: #{tpu_custom_call.1} parent=43 // pred_fallthru
          _
      $region44: #{tpu_custom_call.1} parent=5 // pred_fallthru
        _
    $region6: #{tpu_custom_call.1} parent=1 // loop_footer
      %s21 = sadd.s32 1, %s17
    $region7: #{tpu_custom_call.1} parent=1 // loop_footer_branch
      %16 = sbr.rel target = $region3
    $region8: #{tpu_custom_call.1} parent=1 // loop_exit
      _
    %239 = vsyncpa [#allocation3], 1
    %s240 = scalar_lea.sflag [#allocation3], 1
    %241 = vsyncpa %s240, 1
    %242 = vsyncpa [#allocation6], 1
    %s243 = scalar_lea.sflag [#allocation6], 1
    %244 = vsyncpa %s243, 1
    %245 = vsyncpa [#allocation4], 1
    %s246 = scalar_lea.sflag [#allocation4], 1
    %247 = vsyncpa %s246, 1

</llo_original>
